<compile_context>
chip_gen: v6e
topology: v6e:2x2x1
jax: 0.10.0
libtpu: 0.0.40
codegen_flags: <defaults>
</compile_context>

<pallas_src>
import jax
import jax.numpy as jnp
from jax.experimental import pallas as pl
from jax.experimental.pallas import tpu as pltpu

# ----- synthetic "RoboticEnv" / Hyper_Param configuration (deterministic) ---
STATE_DIM = 16          # self.state_dim
ACTION_DIM = 4          # self.action_dim
NUM_NEURONS = [32, 32]  # Hyper_Param['num_neurons']
BATCH = 2               # small functional-test batch

HID = 128               # hidden widths zero-padded to one 128-lane vreg width


def actor_mlp_kernel(x_ref, w1_ref, b1_ref, w2_ref, b2_ref, w3_ref, b3_ref,
                     o_ref):
    """Fused 3-layer MLP on one (TILE_M, STATE_DIM) activation tile.

    Everything stays f32 (works on v5e's f32-only VPU/EUP; the MXU is nowhere
    near the bottleneck at these sizes).  Hidden lanes 32..127 are exact zeros
    because the weight/bias padding is zero, so ReLU keeps them zero and the
    padded rows of W3 contribute nothing.
    """
    x = x_ref[...]                                            # f32 [TILE_M, 16]

    h = jnp.dot(x, w1_ref[...], preferred_element_type=jnp.float32)
    h = jnp.maximum(h + b1_ref[...], 0.0)                     # hidden_act = ReLU

    h = jnp.dot(h, w2_ref[...], preferred_element_type=jnp.float32)
    h = jnp.maximum(h + b2_ref[...], 0.0)                     # hidden_act = ReLU

    h = jnp.dot(h, w3_ref[...], preferred_element_type=jnp.float32)
    o_ref[...] = jax.nn.sigmoid(h + b3_ref[...])              # out_act = Sigmoid


def _pad2d(a, rows, cols):
    return jnp.pad(a, ((0, rows - a.shape[0]), (0, cols - a.shape[1])))


def prepare_params(params):
    """One-time weight layout prep (hoisted out of the per-call path)."""
    w1, b1, w2, b2, w3, b3 = params
    return (
        _pad2d(w1.astype(jnp.float32), STATE_DIM, HID),   # (16, 128)
        _pad2d(b1.astype(jnp.float32), 1, HID),           # (1, 128)
        _pad2d(w2.astype(jnp.float32), HID, HID),         # (128, 128)
        _pad2d(b2.astype(jnp.float32), 1, HID),           # (1, 128)
        _pad2d(w3.astype(jnp.float32), HID, ACTION_DIM),  # (128, 4)
        b3.astype(jnp.float32),                           # (1, 4)
    )


def _pick_tile_m(batch):
    """Batch tile: 256-aligned, <=1024, >=2 grid steps for throughput batches."""
    half = -(-batch // 2)                 # cdiv(B, 2): aim for >=2 tiles (v7x)
    tile = -(-half // 256) * 256          # round up to 256 (8-sublane & MXU ok)
    return max(256, min(1024, tile))


@jax.jit
def actor_forward(state, padded_params):
    """state: [B, state_dim] f32 -> action: [B, action_dim] f32."""
    w1, b1, w2, b2, w3, b3 = padded_params
    B = state.shape[0]
    tile_m = _pick_tile_m(B)
    grid = (pl.cdiv(B, tile_m),)          # ragged last block handled by Pallas

    act_spec = pl.BlockSpec((tile_m, STATE_DIM), lambda i: (i, 0))    # streamed
    out_spec = pl.BlockSpec((tile_m, ACTION_DIM), lambda i: (i, 0))   # streamed
    w1_spec = pl.BlockSpec((STATE_DIM, HID), lambda i: (0, 0))        # resident
    w2_spec = pl.BlockSpec((HID, HID), lambda i: (0, 0))              # resident
    w3_spec = pl.BlockSpec((HID, ACTION_DIM), lambda i: (0, 0))       # resident
    bh_spec = pl.BlockSpec((1, HID), lambda i: (0, 0))                # resident
    bo_spec = pl.BlockSpec((1, ACTION_DIM), lambda i: (0, 0))         # resident

    return pl.pallas_call(
        actor_mlp_kernel,
        out_shape=jax.ShapeDtypeStruct((B, ACTION_DIM), jnp.float32),
        grid=grid,
        in_specs=[act_spec, w1_spec, bh_spec, w2_spec, bh_spec, w3_spec,
                  bo_spec],
        out_specs=out_spec,
        compiler_params=pltpu.CompilerParams(
            dimension_semantics=("parallel",)),   # v7x: shard M over both TCs
    )(state.astype(jnp.float32), w1, b1, w2, b2, w3, b3)


def init_params(key):
    """Deterministic synthetic init (PyTorch nn.Linear-style uniform ranges)."""
    dims = [STATE_DIM] + NUM_NEURONS + [ACTION_DIM]
    params = []
    for i in range(len(dims) - 1):
        fan_in, fan_out = dims[i], dims[i + 1]
        key, kw, kb = jax.random.split(key, 3)
        bound = 1.0 / jnp.sqrt(jnp.float32(fan_in))
        w = jax.random.uniform(kw, (fan_in, fan_out), jnp.float32,
                               minval=-bound, maxval=bound)
        b = jax.random.uniform(kb, (1, fan_out), jnp.float32,
                               minval=-bound, maxval=bound)
        params += [w, b]
    return tuple(params)


def actor_forward_ref(state, params):
    """Pure-JAX f32 reference for correctness check."""
    w1, b1, w2, b2, w3, b3 = params
    h = jnp.maximum(state @ w1 + b1, 0.0)
    h = jnp.maximum(h @ w2 + b2, 0.0)
    return jax.nn.sigmoid(h @ w3 + b3)


if __name__ == "__main__":
    key = jax.random.PRNGKey(0)
    key, k_state = jax.random.split(key)
    state = jax.random.normal(k_state, (BATCH, STATE_DIM), jnp.float32)
    params = init_params(key)
    padded_params = jax.tree_util.tree_map(jax.block_until_ready,
                                           prepare_params(params))

    # Small functional-test batch (single ragged tile).
    action = jax.block_until_ready(actor_forward(state, padded_params))
    ref = actor_forward_ref(state, params)
    assert action.shape == (BATCH, ACTION_DIM)
    # f32 everywhere now -> tight tolerance.
    assert jnp.allclose(action, ref, atol=1e-5, rtol=1e-5), (
        jnp.max(jnp.abs(action - ref)))

    # Larger, throughput-representative batch (multiple tiles, uneven size).
    key, k_big = jax.random.split(key)
    big_state = jax.random.normal(k_big, (3 * 1024 + 17, STATE_DIM),
                                  jnp.float32)
    big_action = jax.block_until_ready(actor_forward(big_state, padded_params))
    big_ref = actor_forward_ref(big_state, params)
    assert big_action.shape == (big_state.shape[0], ACTION_DIM)
    assert jnp.allclose(big_action, big_ref, atol=1e-5, rtol=1e-5), (
        jnp.max(jnp.abs(big_action - big_ref)))

    print("KERNEL_OK")
</pallas_src>

<mosaic_0001>
module attributes {stable_mosaic.version = 11 : i64} {
  func.func @actor_mlp_kernel(%arg0: i32, %arg1: memref<256x16xf32, #tpu.memory_space<vmem>>, %arg2: memref<16x128xf32, #tpu.memory_space<vmem>>, %arg3: memref<1x128xf32, #tpu.memory_space<vmem>>, %arg4: memref<128x128xf32, #tpu.memory_space<vmem>>, %arg5: memref<1x128xf32, #tpu.memory_space<vmem>>, %arg6: memref<128x4xf32, #tpu.memory_space<vmem>>, %arg7: memref<1x4xf32, #tpu.memory_space<vmem>>, %arg8: memref<256x4xf32, #tpu.memory_space<vmem>>) attributes {dimension_semantics = [#tpu.dimension_semantics<parallel>], iteration_bounds = array<i64: 1>, scalar_prefetch = 0 : i64, scratch_operands = 0 : i64, tpu.core_type = #tpu.core_type<tc>, window_params = [{transform_indices = @transform_0, window_bounds = array<i64: 256, 16>}, {pipeline_mode = #tpu.pipeline_mode<synchronous>, transform_indices = @transform_1, window_bounds = array<i64: 16, 128>}, {pipeline_mode = #tpu.pipeline_mode<synchronous>, transform_indices = @transform_2, window_bounds = array<i64: 1, 128>}, {pipeline_mode = #tpu.pipeline_mode<synchronous>, transform_indices = @transform_3, window_bounds = array<i64: 128, 128>}, {pipeline_mode = #tpu.pipeline_mode<synchronous>, transform_indices = @transform_4, window_bounds = array<i64: 1, 128>}, {pipeline_mode = #tpu.pipeline_mode<synchronous>, transform_indices = @transform_5, window_bounds = array<i64: 128, 4>}, {pipeline_mode = #tpu.pipeline_mode<synchronous>, transform_indices = @transform_6, window_bounds = array<i64: 1, 4>}, {transform_indices = @transform_7, window_bounds = array<i64: 256, 4>}]} {
    %c0 = arith.constant 0 : index
    %c0_0 = arith.constant 0 : index
    %0 = vector.load %arg1[%c0, %c0_0] : memref<256x16xf32, #tpu.memory_space<vmem>>, vector<256x16xf32>
    %c0_1 = arith.constant 0 : index
    %c0_2 = arith.constant 0 : index
    %1 = vector.load %arg2[%c0_1, %c0_2] : memref<16x128xf32, #tpu.memory_space<vmem>>, vector<16x128xf32>
    %cst = arith.constant dense<0.000000e+00> : vector<256x128xf32>
    %2 = tpu.matmul %0, %1, %cst {dimension_numbers = #tpu.dot_dimension_numbers<[1], [0], [0], [1], [0, 0, 1, 1], [], []>} : vector<256x16xf32>, vector<16x128xf32>, vector<256x128xf32> -> vector<256x128xf32>
    %c0_3 = arith.constant 0 : index
    %c0_4 = arith.constant 0 : index
    %3 = vector.load %arg3[%c0_3, %c0_4] : memref<1x128xf32, #tpu.memory_space<vmem>>, vector<1x128xf32>
    %4 = vector.broadcast %3 : vector<1x128xf32> to vector<256x128xf32>
    %5 = arith.addf %2, %4 : vector<256x128xf32>
    %cst_5 = arith.constant 0.000000e+00 : f32
    %6 = vector.broadcast %cst_5 : f32 to vector<256x128xf32>
    %7 = arith.maximumf %5, %6 : vector<256x128xf32>
    %c0_6 = arith.constant 0 : index
    %c0_7 = arith.constant 0 : index
    %8 = vector.load %arg4[%c0_6, %c0_7] : memref<128x128xf32, #tpu.memory_space<vmem>>, vector<128x128xf32>
    %cst_8 = arith.constant dense<0.000000e+00> : vector<256x128xf32>
    %9 = tpu.matmul %7, %8, %cst_8 {dimension_numbers = #tpu.dot_dimension_numbers<[1], [0], [0], [1], [0, 0, 1, 1], [], []>} : vector<256x128xf32>, vector<128x128xf32>, vector<256x128xf32> -> vector<256x128xf32>
    %c0_9 = arith.constant 0 : index
    %c0_10 = arith.constant 0 : index
    %10 = vector.load %arg5[%c0_9, %c0_10] : memref<1x128xf32, #tpu.memory_space<vmem>>, vector<1x128xf32>
    %11 = vector.broadcast %10 : vector<1x128xf32> to vector<256x128xf32>
    %12 = arith.addf %9, %11 : vector<256x128xf32>
    %cst_11 = arith.constant 0.000000e+00 : f32
    %13 = vector.broadcast %cst_11 : f32 to vector<256x128xf32>
    %14 = arith.maximumf %12, %13 : vector<256x128xf32>
    %c0_12 = arith.constant 0 : index
    %c0_13 = arith.constant 0 : index
    %15 = vector.load %arg6[%c0_12, %c0_13] : memref<128x4xf32, #tpu.memory_space<vmem>>, vector<128x4xf32>
    %cst_14 = arith.constant dense<0.000000e+00> : vector<256x4xf32>
    %16 = tpu.matmul %14, %15, %cst_14 {dimension_numbers = #tpu.dot_dimension_numbers<[1], [0], [0], [1], [0, 0, 1, 1], [], []>} : vector<256x128xf32>, vector<128x4xf32>, vector<256x4xf32> -> vector<256x4xf32>
    %c0_15 = arith.constant 0 : index
    %c0_16 = arith.constant 0 : index
    %17 = vector.load %arg7[%c0_15, %c0_16] : memref<1x4xf32, #tpu.memory_space<vmem>>, vector<1x4xf32>
    %18 = vector.broadcast %17 : vector<1x4xf32> to vector<256x4xf32>
    %19 = arith.addf %16, %18 : vector<256x4xf32>
    %20 = arith.negf %19 : vector<256x4xf32>
    %21 = math.exp %20 : vector<256x4xf32>
    %cst_17 = arith.constant 1.000000e+00 : f32
    %22 = vector.broadcast %cst_17 : f32 to vector<256x4xf32>
    %23 = arith.addf %22, %21 : vector<256x4xf32>
    %24 = arith.divf %22, %23 : vector<256x4xf32>
    %c0_18 = arith.constant 0 : index
    %c0_19 = arith.constant 0 : index
    %25 = vector.load %arg8[%c0_18, %c0_19] : memref<256x4xf32, #tpu.memory_space<vmem>>, vector<256x4xf32>
    tpu.vector_store %arg8[%c0_18, %c0_19], %24 {strides = array<i32>} : memref<256x4xf32, #tpu.memory_space<vmem>>, vector<256x4xf32>,
    return
  }
  func.func @transform_0(%arg0: i32) -> (i32, i32) {
    %c0_i32 = arith.constant 0 : i32
    %c0_i32_0 = arith.constant 0 : i32
    return %arg0, %c0_i32 : i32, i32
  }
  func.func @transform_1(%arg0: i32) -> (i32, i32) {
    %c0_i32 = arith.constant 0 : i32
    %c0_i32_0 = arith.constant 0 : i32
    %c0_i32_1 = arith.constant 0 : i32
    return %c0_i32, %c0_i32_0 : i32, i32
  }
  func.func @transform_2(%arg0: i32) -> (i32, i32) {
    %c0_i32 = arith.constant 0 : i32
    %c0_i32_0 = arith.constant 0 : i32
    %c0_i32_1 = arith.constant 0 : i32
    return %c0_i32, %c0_i32_0 : i32, i32
  }
  func.func @transform_3(%arg0: i32) -> (i32, i32) {
    %c0_i32 = arith.constant 0 : i32
    %c0_i32_0 = arith.constant 0 : i32
    %c0_i32_1 = arith.constant 0 : i32
    return %c0_i32, %c0_i32_0 : i32, i32
  }
  func.func @transform_4(%arg0: i32) -> (i32, i32) {
    %c0_i32 = arith.constant 0 : i32
    %c0_i32_0 = arith.constant 0 : i32
    %c0_i32_1 = arith.constant 0 : i32
    return %c0_i32, %c0_i32_0 : i32, i32
  }
  func.func @transform_5(%arg0: i32) -> (i32, i32) {
    %c0_i32 = arith.constant 0 : i32
    %c0_i32_0 = arith.constant 0 : i32
    %c0_i32_1 = arith.constant 0 : i32
    return %c0_i32, %c0_i32_0 : i32, i32
  }
  func.func @transform_6(%arg0: i32) -> (i32, i32) {
    %c0_i32 = arith.constant 0 : i32
    %c0_i32_0 = arith.constant 0 : i32
    %c0_i32_1 = arith.constant 0 : i32
    return %c0_i32, %c0_i32_0 : i32, i32
  }
  func.func @transform_7(%arg0: i32) -> (i32, i32) {
    %c0_i32 = arith.constant 0 : i32
    %c0_i32_0 = arith.constant 0 : i32
    return %arg0, %c0_i32 : i32, i32
  }
}

</mosaic_0001>

<llo_original>
// kernel: actor_forward.1
$region0: #{actor_forward.1}
  #allocation0 [shape = 'u32[]', space=smem, size = 0x4, offset = 0x4, fixed_abs, tag = 'smem constant byte address 0x4 - core index']
  #allocation1 [shape = 'u32[144,128]{1,0:T(1,128)}', space=vmem, size = 0x12000, scoped, tag = 'internal scratch']
  %s0 = inlined_call_operand.vmem [shape: f32[2,16], index: 0, kind: input, shape index: {}]
  %s1 = inlined_call_operand.hbm [shape: f32[16,128], index: 1, kind: input, shape index: {}]
  %s2 = inlined_call_operand.vmem [shape: f32[1,128], index: 2, kind: input, shape index: {}]
  %s3 = inlined_call_operand.vmem [shape: f32[128,128], index: 3, kind: input, shape index: {}]
  %s4 = inlined_call_operand.vmem [shape: f32[1,128], index: 4, kind: input, shape index: {}]
  %s5 = inlined_call_operand.vmem [shape: f32[128,4], index: 5, kind: input, shape index: {}]
  %s6 = inlined_call_operand.vmem [shape: f32[1,4], index: 6, kind: input, shape index: {}]
  %s7 = inlined_call_operand.hbm [shape: f32[2,4], index: 7, kind: output, shape index: {}]
  %s8 = sld [smem:[#allocation0]]
  $region42: #{actor_forward.1} parent=0
    _
  %s10 = ssub.s32 1, %s8
  %s11 = scalar_select 0, %s10, %s8
  $region1: #{actor_forward.1} parent=0
    #allocation2 [shape = 'u8[8192]{0}', space=vmem, size = 0x2000, scoped, tag = 'input window, operand 1, single buffered']
    #allocation3 [shape = 's32[1]{0}', space=sflag, size = 0x4, scoped, tag = 'scoped memory for actor_forward.1']
    #allocation4 [shape = 's32[1]{0}', space=sflag, size = 0x4, scoped, tag = 'scoped memory for actor_forward.1']
    #allocation5 [shape = 'u8[131072]{0}', space=vmem, size = 0x20000, scoped, tag = 'output window, operand 0, single buffered']
    %12 = vsyncpa [#allocation3], 0
    %13 = vsyncpa [#allocation4], 0
    // Predicated region
    $region2: #{actor_forward.1} parent=1 // pred_check
      _
    $region3: #{actor_forward.1} parent=1 // pred_check_branch
      %15 = sbr.rel (0) target = $region5
    $region4: #{actor_forward.1} parent=1 // pred_region
      _
    $region5: #{actor_forward.1} parent=1 // pred_fallthru
      _
    // Predicated region
    $region6: #{actor_forward.1} parent=1 // pred_check
      _
    $region7: #{actor_forward.1} parent=1 // pred_check_branch
      %17 = sbr.rel (0) target = $region9
    $region8: #{actor_forward.1} parent=1 // pred_region
      %s19 = ssub.s32 256, 256
      %20 = vsyncadd [#allocation3], %s19
      %s21 = sshll.u32 [#allocation2], 4
      %s22 = int_to_ptr.vmem [resolvable:$true] %s21
      %27 = dma.hbm_to_vmem [thread:$0]  %s1, 256, %s22, [#allocation3], 128, 128, 8
    $region9: #{actor_forward.1} parent=1 // pred_fallthru
      _
    // Predicated region
    $region10: #{actor_forward.1} parent=1 // pred_check
      _
    $region11: #{actor_forward.1} parent=1 // pred_check_branch
      %29 = sbr.rel (0) target = $region13
    $region12: #{actor_forward.1} parent=1 // pred_region
      _
    $region13: #{actor_forward.1} parent=1 // pred_fallthru
      _
    // Predicated region
    $region14: #{actor_forward.1} parent=1 // pred_check
      _
    $region15: #{actor_forward.1} parent=1 // pred_check_branch
      %31 = sbr.rel (0) target = $region17
    $region16: #{actor_forward.1} parent=1 // pred_region
      _
    $region17: #{actor_forward.1} parent=1 // pred_fallthru
      _
    // Predicated region
    $region18: #{actor_forward.1} parent=1 // pred_check
      _
    $region19: #{actor_forward.1} parent=1 // pred_check_branch
      %33 = sbr.rel (0) target = $region21
    $region20: #{actor_forward.1} parent=1 // pred_region
      _
    $region21: #{actor_forward.1} parent=1 // pred_fallthru
      _
    // Predicated region
    $region22: #{actor_forward.1} parent=1 // pred_check
      _
    $region23: #{actor_forward.1} parent=1 // pred_check_branch
      %35 = sbr.rel (0) target = $region25
    $region24: #{actor_forward.1} parent=1 // pred_region
      _
    $region25: #{actor_forward.1} parent=1 // pred_fallthru
      _
    // Predicated region
    $region26: #{actor_forward.1} parent=1 // pred_check
      _
    $region27: #{actor_forward.1} parent=1 // pred_check_branch
      %37 = sbr.rel (0) target = $region29
    $region28: #{actor_forward.1} parent=1 // pred_region
      _
    $region29: #{actor_forward.1} parent=1 // pred_fallthru
      _
    // Predicated region
    $region30: #{actor_forward.1} parent=1 // pred_check
      _
    $region31: #{actor_forward.1} parent=1 // pred_check_branch
      %39 = sbr.rel (0) target = $region33
    $region32: #{actor_forward.1} parent=1 // pred_region
      %40 = dma.done [#allocation3], 256
    $region33: #{actor_forward.1} parent=1 // pred_fallthru
      _
    %v41 = vld [vmem:[%s0] sm:$0xff]
    %v42 = vld [vmem:[%s0 + $0x8] sm:$0xff]
    %v43 = vld [vmem:[%s0 + $0x10] sm:$0xff]
    %v44 = vld [vmem:[%s0 + $0x18] sm:$0xff]
    %v45 = vld [vmem:[%s0 + $0x20] sm:$0xff]
    %v46 = vld [vmem:[%s0 + $0x28] sm:$0xff]
    %v47 = vld [vmem:[%s0 + $0x30] sm:$0xff]
    %v48 = vld [vmem:[%s0 + $0x38] sm:$0xff]
    %v49 = vld [vmem:[%s0 + $0x40] sm:$0xff]
    %v50 = vld [vmem:[%s0 + $0x48] sm:$0xff]
    %v51 = vld [vmem:[%s0 + $0x50] sm:$0xff]
    %v52 = vld [vmem:[%s0 + $0x58] sm:$0xff]
    %v53 = vld [vmem:[%s0 + $0x60] sm:$0xff]
    %v54 = vld [vmem:[%s0 + $0x68] sm:$0xff]
    %v55 = vld [vmem:[%s0 + $0x70] sm:$0xff]
    %v56 = vld [vmem:[%s0 + $0x78] sm:$0xff]
    %v57 = vld [vmem:[%s0 + $0x80] sm:$0xff]
    %v58 = vld [vmem:[%s0 + $0x88] sm:$0xff]
    %v59 = vld [vmem:[%s0 + $0x90] sm:$0xff]
    %v60 = vld [vmem:[%s0 + $0x98] sm:$0xff]
    %v61 = vld [vmem:[%s0 + $0xa0] sm:$0xff]
    %v62 = vld [vmem:[%s0 + $0xa8] sm:$0xff]
    %v63 = vld [vmem:[%s0 + $0xb0] sm:$0xff]
    %v64 = vld [vmem:[%s0 + $0xb8] sm:$0xff]
    %v65 = vld [vmem:[%s0 + $0xc0] sm:$0xff]
    %v66 = vld [vmem:[%s0 + $0xc8] sm:$0xff]
    %v67 = vld [vmem:[%s0 + $0xd0] sm:$0xff]
    %v68 = vld [vmem:[%s0 + $0xd8] sm:$0xff]
    %v69 = vld [vmem:[%s0 + $0xe0] sm:$0xff]
    %v70 = vld [vmem:[%s0 + $0xe8] sm:$0xff]
    %v71 = vld [vmem:[%s0 + $0xf0] sm:$0xff]
    %v72 = vld [vmem:[%s0 + $0xf8] sm:$0xff]
    %v73 = vld [vmem:[#allocation2] sm:$0xff]
    %v74 = vld [vmem:[#allocation2 + $0x8] sm:$0xff]
    %v75 = vld [vmem:[%s2] sm:$0x1]
    %v77 = vlaneseq
    %v78 = vshrl.u32 %v77, 7
    %v79 = vsub.s32 0, %v78
    %v80 = vrot.slane %v75, %v79
    %vm82 = vcmask 130048
    %v84 = vsel %vm82, %v41, 0
    %v87 = vsel %vm82, %v42, 0
    %v90 = vsel %vm82, %v43, 0
    %v93 = vsel %vm82, %v44, 0
    %v96 = vsel %vm82, %v45, 0
    %v99 = vsel %vm82, %v46, 0
    %v102 = vsel %vm82, %v47, 0
    %v105 = vsel %vm82, %v48, 0
    %v108 = vsel %vm82, %v49, 0
    %v111 = vsel %vm82, %v50, 0
    %v114 = vsel %vm82, %v51, 0
    %v117 = vsel %vm82, %v52, 0
    %v120 = vsel %vm82, %v53, 0
    %v123 = vsel %vm82, %v54, 0
    %v126 = vsel %vm82, %v55, 0
    %v129 = vsel %vm82, %v56, 0
    %v132 = vsel %vm82, %v57, 0
    %v135 = vsel %vm82, %v58, 0
    %v138 = vsel %vm82, %v59, 0
    %v141 = vsel %vm82, %v60, 0
    %v144 = vsel %vm82, %v61, 0
    %v147 = vsel %vm82, %v62, 0
    %v150 = vsel %vm82, %v63, 0
    %v153 = vsel %vm82, %v64, 0
    %v156 = vsel %vm82, %v65, 0
    %v159 = vsel %vm82, %v66, 0
    %v162 = vsel %vm82, %v67, 0
    %v165 = vsel %vm82, %v68, 0
    %v168 = vsel %vm82, %v69, 0
    %v171 = vsel %vm82, %v70, 0
    %v174 = vsel %vm82, %v71, 0
    %v177 = vsel %vm82, %v72, 0
    %179 = vmatprep.subr.mxu0 0.0
    %180 = vmatpush1.msra.mxu0 0.0
    %181 = vmatprep.subr.mxu0 0.0
    %182 = vmatpush1.msra.mxu0 0.0
    %183 = vmatprep.subr.mxu0 0.0
    %184 = vmatpush1.msra.mxu0 0.0
    %185 = vmatprep.subr.mxu0 0.0
    %186 = vmatpush1.msra.mxu0 0.0
    %187 = vmatprep.subr.mxu0 0.0
    %188 = vmatpush1.msra.mxu0 0.0
    %189 = vmatprep.subr.mxu0 0.0
    %190 = vmatpush1.msra.mxu0 0.0
    %191 = vmatprep.subr.mxu0 0.0
    %192 = vmatpush1.msra.mxu0 0.0
    %193 = vmatprep.subr.mxu0 0.0
    %194 = vmatpush1.msra.mxu0 0.0
    %195 = vmatprep.subr.mxu0 0.0
    %196 = vmatpush1.msra.mxu0 0.0
    %197 = vmatprep.subr.mxu0 0.0
    %198 = vmatpush1.msra.mxu0 0.0
    %199 = vmatprep.subr.mxu0 0.0
    %200 = vmatpush1.msra.mxu0 0.0
    %201 = vmatprep.subr.mxu0 0.0
    %202 = vmatpush1.msra.mxu0 0.0
    %203 = vmatprep.subr.mxu0 0.0
    %204 = vmatpush1.msra.mxu0 0.0
    %205 = vmatprep.subr.mxu0 0.0
    %206 = vmatpush1.msra.mxu0 0.0
    %207 = vmatprep.subr.mxu0 0.0
    %208 = vmatpush1.msra.mxu0 %v74
    %209 = vmatprep.subr.mxu0 0.0
    %210 = vmatpush1.msra.mxu0 %v73
    %211 = vmatprep.subr.mxu0 0.0
    %212 = vmatpush2.msra.mxu0 0.0
    %213 = vmatprep.subr.mxu0 0.0
    %214 = vmatpush2.msra.mxu0 0.0
    %215 = vmatprep.subr.mxu0 0.0
    %216 = vmatpush2.msra.mxu0 0.0
    %217 = vmatprep.subr.mxu0 0.0
    %218 = vmatpush2.msra.mxu0 0.0
    %219 = vmatprep.subr.mxu0 0.0
    %220 = vmatpush2.msra.mxu0 0.0
    %221 = vmatprep.subr.mxu0 0.0
    %222 = vmatpush2.msra.mxu0 0.0
    %223 = vmatprep.subr.mxu0 0.0
    %224 = vmatpush2.msra.mxu0 0.0
    %225 = vmatprep.subr.mxu0 0.0
    %226 = vmatpush2.msra.mxu0 0.0
    %227 = vmatprep.subr.mxu0 0.0
    %228 = vmatpush2.msra.mxu0 0.0
    %229 = vmatprep.subr.mxu0 0.0
    %230 = vmatpush2.msra.mxu0 0.0
    %231 = vmatprep.subr.mxu0 0.0
    %232 = vmatpush2.msra.mxu0 0.0
    %233 = vmatprep.subr.mxu0 0.0
    %234 = vmatpush2.msra.mxu0 0.0
    %235 = vmatprep.subr.mxu0 0.0
    %236 = vmatpush2.msra.mxu0 0.0
    %237 = vmatprep.subr.mxu0 0.0
    %238 = vmatpush2.msra.mxu0 0.0
    %239 = vmatprep.subr.mxu0 0.0
    %240 = vmatpush2.msra.mxu0 0.0
    %241 = vmatprep.subr.mxu0 0.0
    %242 = vmatpush2.msra.mxu0 0.0
    %243 = vmatprep.mubr.f32.mxu0 0.0
    %244 = vmatmul.mubr.f32.gmra.mxu0 %v84
    %v245 = vpop.f32.mrf.mxu0
    %v246 = vadd.f32 %v80, %v245
    %v247 = vpop.f32.mrf.mxu0
    %248 = vmatprep.mubr.f32.mxu0 0.0
    %249 = vmatmul.mubr.f32.gmra.mxu0 %v87
    %v250 = vpop.f32.mrf.mxu0
    %v251 = vadd.f32 %v80, %v250
    %v252 = vpop.f32.mrf.mxu0
    %253 = vmatprep.mubr.f32.mxu0 0.0
    %254 = vmatmul.mubr.f32.gmra.mxu0 %v90
    %v255 = vpop.f32.mrf.mxu0
    %v256 = vadd.f32 %v80, %v255
    %v257 = vpop.f32.mrf.mxu0
    %258 = vmatprep.mubr.f32.mxu0 0.0
    %259 = vmatmul.mubr.f32.gmra.mxu0 %v93
    %v260 = vpop.f32.mrf.mxu0
    %v261 = vadd.f32 %v80, %v260
    %v262 = vpop.f32.mrf.mxu0
    %263 = vmatprep.mubr.f32.mxu0 0.0
    %264 = vmatmul.mubr.f32.gmra.mxu0 %v96
    %v265 = vpop.f32.mrf.mxu0
    %v266 = vadd.f32 %v80, %v265
    %v267 = vpop.f32.mrf.mxu0
    %268 = vmatprep.mubr.f32.mxu0 0.0
    %269 = vmatmul.mubr.f32.gmra.mxu0 %v99
    %v270 = vpop.f32.mrf.mxu0
    %v271 = vadd.f32 %v80, %v270
    %v272 = vpop.f32.mrf.mxu0
    %273 = vmatprep.mubr.f32.mxu0 0.0
    %274 = vmatmul.mubr.f32.gmra.mxu0 %v102
    %v275 = vpop.f32.mrf.mxu0
    %v276 = vadd.f32 %v80, %v275
    %v277 = vpop.f32.mrf.mxu0
    %278 = vmatprep.mubr.f32.mxu0 0.0
    %279 = vmatmul.mubr.f32.gmra.mxu0 %v105
    %v280 = vpop.f32.mrf.mxu0
    %v281 = vadd.f32 %v80, %v280
    %v282 = vpop.f32.mrf.mxu0
    %283 = vmatprep.mubr.f32.mxu0 0.0
    %284 = vmatmul.mubr.f32.gmra.mxu0 %v108
    %v285 = vpop.f32.mrf.mxu0
    %v286 = vadd.f32 %v80, %v285
    %v287 = vpop.f32.mrf.mxu0
    %288 = vmatprep.mubr.f32.mxu0 0.0
    %289 = vmatmul.mubr.f32.gmra.mxu0 %v111
    %v290 = vpop.f32.mrf.mxu0
    %v291 = vadd.f32 %v80, %v290
    %v292 = vpop.f32.mrf.mxu0
    %293 = vmatprep.mubr.f32.mxu0 0.0
    %294 = vmatmul.mubr.f32.gmra.mxu0 %v114
    %v295 = vpop.f32.mrf.mxu0
    %v296 = vadd.f32 %v80, %v295
    %v297 = vpop.f32.mrf.mxu0
    %298 = vmatprep.mubr.f32.mxu0 0.0
    %299 = vmatmul.mubr.f32.gmra.mxu0 %v117
    %v300 = vpop.f32.mrf.mxu0
    %v301 = vadd.f32 %v80, %v300
    %v302 = vpop.f32.mrf.mxu0
    %303 = vmatprep.mubr.f32.mxu0 0.0
    %304 = vmatmul.mubr.f32.gmra.mxu0 %v120
    %v305 = vpop.f32.mrf.mxu0
    %v306 = vadd.f32 %v80, %v305
    %v307 = vpop.f32.mrf.mxu0
    %308 = vmatprep.mubr.f32.mxu0 0.0
    %309 = vmatmul.mubr.f32.gmra.mxu0 %v123
    %v310 = vpop.f32.mrf.mxu0
    %v311 = vadd.f32 %v80, %v310
    %v312 = vpop.f32.mrf.mxu0
    %313 = vmatprep.mubr.f32.mxu0 0.0
    %314 = vmatmul.mubr.f32.gmra.mxu0 %v126
    %v315 = vpop.f32.mrf.mxu0
    %v316 = vadd.f32 %v80, %v315
    %v317 = vpop.f32.mrf.mxu0
    %318 = vmatprep.mubr.f32.mxu0 0.0
    %319 = vmatmul.mubr.f32.gmra.mxu0 %v129
    %v320 = vpop.f32.mrf.mxu0
    %v321 = vadd.f32 %v80, %v320
    %v322 = vpop.f32.mrf.mxu0
    %323 = vmatprep.mubr.f32.mxu0 0.0
    %324 = vmatmul.mubr.f32.gmra.mxu0 %v132
    %v325 = vpop.f32.mrf.mxu0
    %v326 = vadd.f32 %v80, %v325
    %v327 = vpop.f32.mrf.mxu0
    %328 = vmatprep.mubr.f32.mxu0 0.0
    %329 = vmatmul.mubr.f32.gmra.mxu0 %v135
    %v330 = vpop.f32.mrf.mxu0
    %v331 = vadd.f32 %v80, %v330
    %v332 = vpop.f32.mrf.mxu0
    %333 = vmatprep.mubr.f32.mxu0 0.0
    %334 = vmatmul.mubr.f32.gmra.mxu0 %v138
    %v335 = vpop.f32.mrf.mxu0
    %v336 = vadd.f32 %v80, %v335
    %v337 = vpop.f32.mrf.mxu0
    %338 = vmatprep.mubr.f32.mxu0 0.0
    %339 = vmatmul.mubr.f32.gmra.mxu0 %v141
    %v340 = vpop.f32.mrf.mxu0
    %v341 = vadd.f32 %v80, %v340
    %v342 = vpop.f32.mrf.mxu0
    %343 = vmatprep.mubr.f32.mxu0 0.0
    %344 = vmatmul.mubr.f32.gmra.mxu0 %v144
    %v345 = vpop.f32.mrf.mxu0
    %v346 = vadd.f32 %v80, %v345
    %v347 = vpop.f32.mrf.mxu0
    %348 = vmatprep.mubr.f32.mxu0 0.0
    %349 = vmatmul.mubr.f32.gmra.mxu0 %v147
    %v350 = vpop.f32.mrf.mxu0
    %v351 = vadd.f32 %v80, %v350
    %v352 = vpop.f32.mrf.mxu0
    %353 = vmatprep.mubr.f32.mxu0 0.0
    %354 = vmatmul.mubr.f32.gmra.mxu0 %v150
    %v355 = vpop.f32.mrf.mxu0
    %v356 = vadd.f32 %v80, %v355
    %v357 = vpop.f32.mrf.mxu0
    %358 = vmatprep.mubr.f32.mxu0 0.0
    %359 = vmatmul.mubr.f32.gmra.mxu0 %v153
    %v360 = vpop.f32.mrf.mxu0
    %v361 = vadd.f32 %v80, %v360
    %v362 = vpop.f32.mrf.mxu0
    %363 = vmatprep.mubr.f32.mxu0 0.0
    %364 = vmatmul.mubr.f32.gmra.mxu0 %v156
    %v365 = vpop.f32.mrf.mxu0
    %v366 = vadd.f32 %v80, %v365
    %v367 = vpop.f32.mrf.mxu0
    %368 = vmatprep.mubr.f32.mxu0 0.0
    %369 = vmatmul.mubr.f32.gmra.mxu0 %v159
    %v370 = vpop.f32.mrf.mxu0
    %v371 = vadd.f32 %v80, %v370
    %v372 = vpop.f32.mrf.mxu0
    %373 = vmatprep.mubr.f32.mxu0 0.0
    %374 = vmatmul.mubr.f32.gmra.mxu0 %v162
    %v375 = vpop.f32.mrf.mxu0
    %v376 = vadd.f32 %v80, %v375
    %v377 = vpop.f32.mrf.mxu0
    %378 = vmatprep.mubr.f32.mxu0 0.0
    %379 = vmatmul.mubr.f32.gmra.mxu0 %v165
    %v380 = vpop.f32.mrf.mxu0
    %v381 = vadd.f32 %v80, %v380
    %v382 = vpop.f32.mrf.mxu0
    %383 = vmatprep.mubr.f32.mxu0 0.0
    %384 = vmatmul.mubr.f32.gmra.mxu0 %v168
    %v385 = vpop.f32.mrf.mxu0
    %v386 = vadd.f32 %v80, %v385
    %v387 = vpop.f32.mrf.mxu0
    %388 = vmatprep.mubr.f32.mxu0 0.0
    %389 = vmatmul.mubr.f32.gmra.mxu0 %v171
    %v390 = vpop.f32.mrf.mxu0
    %v391 = vadd.f32 %v80, %v390
    %v392 = vpop.f32.mrf.mxu0
    %393 = vmatprep.mubr.f32.mxu0 0.0
    %394 = vmatmul.mubr.f32.gmra.mxu0 %v174
    %v395 = vpop.f32.mrf.mxu0
    %v396 = vadd.f32 %v80, %v395
    %v397 = vpop.f32.mrf.mxu0
    %398 = vmatprep.mubr.f32.mxu0 0.0
    %399 = vmatmul.mubr.f32.gmra.mxu0 %v177
    %v400 = vpop.f32.mrf.mxu0
    %v401 = vadd.f32 %v80, %v400
    %v402 = vpop.f32.mrf.mxu0
    %403 = vdwg.mxu0
    %v404 = vmax.f32 %v246, 0.0
    %v405 = vmax.f32 %v251, 0.0
    %v406 = vmax.f32 %v256, 0.0
    %v407 = vmax.f32 %v261, 0.0
    %v408 = vmax.f32 %v266, 0.0
    %v409 = vmax.f32 %v271, 0.0
    %v410 = vmax.f32 %v276, 0.0
    %v411 = vmax.f32 %v281, 0.0
    %v412 = vmax.f32 %v286, 0.0
    %v413 = vmax.f32 %v291, 0.0
    %v414 = vmax.f32 %v296, 0.0
    %v415 = vmax.f32 %v301, 0.0
    %v416 = vmax.f32 %v306, 0.0
    %v417 = vmax.f32 %v311, 0.0
    %v418 = vmax.f32 %v316, 0.0
    %v419 = vmax.f32 %v321, 0.0
    %v420 = vmax.f32 %v326, 0.0
    %v421 = vmax.f32 %v331, 0.0
    %v422 = vmax.f32 %v336, 0.0
    %v423 = vmax.f32 %v341, 0.0
    %v424 = vmax.f32 %v346, 0.0
    %v425 = vmax.f32 %v351, 0.0
    %v426 = vmax.f32 %v356, 0.0
    %v427 = vmax.f32 %v361, 0.0
    %v428 = vmax.f32 %v366, 0.0
    %v429 = vmax.f32 %v371, 0.0
    %v430 = vmax.f32 %v376, 0.0
    %v431 = vmax.f32 %v381, 0.0
    %v432 = vmax.f32 %v386, 0.0
    %v433 = vmax.f32 %v391, 0.0
    %v434 = vmax.f32 %v396, 0.0
    %v435 = vmax.f32 %v401, 0.0
    %v436 = vld [vmem:[%s3] sm:$0xff]
    %v437 = vld [vmem:[%s3 + $0x8] sm:$0xff]
    %v438 = vld [vmem:[%s3 + $0x10] sm:$0xff]
    %v439 = vld [vmem:[%s3 + $0x18] sm:$0xff]
    %v440 = vld [vmem:[%s3 + $0x20] sm:$0xff]
    %v441 = vld [vmem:[%s3 + $0x28] sm:$0xff]
    %v442 = vld [vmem:[%s3 + $0x30] sm:$0xff]
    %v443 = vld [vmem:[%s3 + $0x38] sm:$0xff]
    %v444 = vld [vmem:[%s3 + $0x40] sm:$0xff]
    %v445 = vld [vmem:[%s3 + $0x48] sm:$0xff]
    %v446 = vld [vmem:[%s3 + $0x50] sm:$0xff]
    %v447 = vld [vmem:[%s3 + $0x58] sm:$0xff]
    %v448 = vld [vmem:[%s3 + $0x60] sm:$0xff]
    %v449 = vld [vmem:[%s3 + $0x68] sm:$0xff]
    %v450 = vld [vmem:[%s3 + $0x70] sm:$0xff]
    %v451 = vld [vmem:[%s3 + $0x78] sm:$0xff]
    %v452 = vld [vmem:[%s4] sm:$0x1]
    %v454 = vlaneseq
    %v455 = vshrl.u32 %v454, 7
    %v456 = vsub.s32 0, %v455
    %v457 = vrot.slane %v452, %v456
    %459 = vmatprep.subr.mxu0 0.0
    %460 = vmatpush1.msra.mxu0 %v451
    %461 = vmatprep.subr.mxu0 0.0
    %462 = vmatpush1.msra.mxu0 %v450
    %463 = vmatprep.subr.mxu0 0.0
    %464 = vmatpush1.msra.mxu0 %v449
    %465 = vmatprep.subr.mxu0 0.0
    %466 = vmatpush1.msra.mxu0 %v448
    %467 = vmatprep.subr.mxu0 0.0
    %468 = vmatpush1.msra.mxu0 %v447
    %469 = vmatprep.subr.mxu0 0.0
    %470 = vmatpush1.msra.mxu0 %v446
    %471 = vmatprep.subr.mxu0 0.0
    %472 = vmatpush1.msra.mxu0 %v445
    %473 = vmatprep.subr.mxu0 0.0
    %474 = vmatpush1.msra.mxu0 %v444
    %475 = vmatprep.subr.mxu0 0.0
    %476 = vmatpush1.msra.mxu0 %v443
    %477 = vmatprep.subr.mxu0 0.0
    %478 = vmatpush1.msra.mxu0 %v442
    %479 = vmatprep.subr.mxu0 0.0
    %480 = vmatpush1.msra.mxu0 %v441
    %481 = vmatprep.subr.mxu0 0.0
    %482 = vmatpush1.msra.mxu0 %v440
    %483 = vmatprep.subr.mxu0 0.0
    %484 = vmatpush1.msra.mxu0 %v439
    %485 = vmatprep.subr.mxu0 0.0
    %486 = vmatpush1.msra.mxu0 %v438
    %487 = vmatprep.subr.mxu0 0.0
    %488 = vmatpush1.msra.mxu0 %v437
    %489 = vmatprep.subr.mxu0 0.0
    %490 = vmatpush1.msra.mxu0 %v436
    %491 = vmatprep.subr.mxu0 0.0
    %492 = vmatpush2.msra.mxu0 0.0
    %493 = vmatprep.subr.mxu0 0.0
    %494 = vmatpush2.msra.mxu0 0.0
    %495 = vmatprep.subr.mxu0 0.0
    %496 = vmatpush2.msra.mxu0 0.0
    %497 = vmatprep.subr.mxu0 0.0
    %498 = vmatpush2.msra.mxu0 0.0
    %499 = vmatprep.subr.mxu0 0.0
    %500 = vmatpush2.msra.mxu0 0.0
    %501 = vmatprep.subr.mxu0 0.0
    %502 = vmatpush2.msra.mxu0 0.0
    %503 = vmatprep.subr.mxu0 0.0
    %504 = vmatpush2.msra.mxu0 0.0
    %505 = vmatprep.subr.mxu0 0.0
    %506 = vmatpush2.msra.mxu0 0.0
    %507 = vmatprep.subr.mxu0 0.0
    %508 = vmatpush2.msra.mxu0 0.0
    %509 = vmatprep.subr.mxu0 0.0
    %510 = vmatpush2.msra.mxu0 0.0
    %511 = vmatprep.subr.mxu0 0.0
    %512 = vmatpush2.msra.mxu0 0.0
    %513 = vmatprep.subr.mxu0 0.0
    %514 = vmatpush2.msra.mxu0 0.0
    %515 = vmatprep.subr.mxu0 0.0
    %516 = vmatpush2.msra.mxu0 0.0
    %517 = vmatprep.subr.mxu0 0.0
    %518 = vmatpush2.msra.mxu0 0.0
    %519 = vmatprep.subr.mxu0 0.0
    %520 = vmatpush2.msra.mxu0 0.0
    %521 = vmatprep.subr.mxu0 0.0
    %522 = vmatpush2.msra.mxu0 0.0
    %523 = vmatprep.mubr.f32.mxu0 0.0
    %524 = vmatmul.mubr.f32.gmra.mxu0 %v404
    %v525 = vpop.f32.mrf.mxu0
    %v526 = vadd.f32 %v457, %v525
    %v527 = vpop.f32.mrf.mxu0
    %528 = vmatprep.mubr.f32.mxu0 0.0
    %529 = vmatmul.mubr.f32.gmra.mxu0 %v405
    %v530 = vpop.f32.mrf.mxu0
    %v531 = vadd.f32 %v457, %v530
    %v532 = vpop.f32.mrf.mxu0
    %533 = vmatprep.mubr.f32.mxu0 0.0
    %534 = vmatmul.mubr.f32.gmra.mxu0 %v406
    %v535 = vpop.f32.mrf.mxu0
    %v536 = vadd.f32 %v457, %v535
    %v537 = vpop.f32.mrf.mxu0
    %538 = vmatprep.mubr.f32.mxu0 0.0
    %539 = vmatmul.mubr.f32.gmra.mxu0 %v407
    %v540 = vpop.f32.mrf.mxu0
    %v541 = vadd.f32 %v457, %v540
    %v542 = vpop.f32.mrf.mxu0
    %543 = vmatprep.mubr.f32.mxu0 0.0
    %544 = vmatmul.mubr.f32.gmra.mxu0 %v408
    %v545 = vpop.f32.mrf.mxu0
    %v546 = vadd.f32 %v457, %v545
    %v547 = vpop.f32.mrf.mxu0
    %548 = vmatprep.mubr.f32.mxu0 0.0
    %549 = vmatmul.mubr.f32.gmra.mxu0 %v409
    %v550 = vpop.f32.mrf.mxu0
    %v551 = vadd.f32 %v457, %v550
    %v552 = vpop.f32.mrf.mxu0
    %553 = vmatprep.mubr.f32.mxu0 0.0
    %554 = vmatmul.mubr.f32.gmra.mxu0 %v410
    %v555 = vpop.f32.mrf.mxu0
    %v556 = vadd.f32 %v457, %v555
    %v557 = vpop.f32.mrf.mxu0
    %558 = vmatprep.mubr.f32.mxu0 0.0
    %559 = vmatmul.mubr.f32.gmra.mxu0 %v411
    %v560 = vpop.f32.mrf.mxu0
    %v561 = vadd.f32 %v457, %v560
    %v562 = vpop.f32.mrf.mxu0
    %563 = vmatprep.mubr.f32.mxu0 0.0
    %564 = vmatmul.mubr.f32.gmra.mxu0 %v412
    %v565 = vpop.f32.mrf.mxu0
    %v566 = vadd.f32 %v457, %v565
    %v567 = vpop.f32.mrf.mxu0
    %568 = vmatprep.mubr.f32.mxu0 0.0
    %569 = vmatmul.mubr.f32.gmra.mxu0 %v413
    %v570 = vpop.f32.mrf.mxu0
    %v571 = vadd.f32 %v457, %v570
    %v572 = vpop.f32.mrf.mxu0
    %573 = vmatprep.mubr.f32.mxu0 0.0
    %574 = vmatmul.mubr.f32.gmra.mxu0 %v414
    %v575 = vpop.f32.mrf.mxu0
    %v576 = vadd.f32 %v457, %v575
    %v577 = vpop.f32.mrf.mxu0
    %578 = vmatprep.mubr.f32.mxu0 0.0
    %579 = vmatmul.mubr.f32.gmra.mxu0 %v415
    %v580 = vpop.f32.mrf.mxu0
    %v581 = vadd.f32 %v457, %v580
    %v582 = vpop.f32.mrf.mxu0
    %583 = vmatprep.mubr.f32.mxu0 0.0
    %584 = vmatmul.mubr.f32.gmra.mxu0 %v416
    %v585 = vpop.f32.mrf.mxu0
    %v586 = vadd.f32 %v457, %v585
    %v587 = vpop.f32.mrf.mxu0
    %588 = vmatprep.mubr.f32.mxu0 0.0
    %589 = vmatmul.mubr.f32.gmra.mxu0 %v417
    %v590 = vpop.f32.mrf.mxu0
    %v591 = vadd.f32 %v457, %v590
    %v592 = vpop.f32.mrf.mxu0
    %593 = vmatprep.mubr.f32.mxu0 0.0
    %594 = vmatmul.mubr.f32.gmra.mxu0 %v418
    %v595 = vpop.f32.mrf.mxu0
    %v596 = vadd.f32 %v457, %v595
    %v597 = vpop.f32.mrf.mxu0
    %598 = vmatprep.mubr.f32.mxu0 0.0
    %599 = vmatmul.mubr.f32.gmra.mxu0 %v419
    %v600 = vpop.f32.mrf.mxu0
    %v601 = vadd.f32 %v457, %v600
    %v602 = vpop.f32.mrf.mxu0
    %603 = vmatprep.mubr.f32.mxu0 0.0
    %604 = vmatmul.mubr.f32.gmra.mxu0 %v420
    %v605 = vpop.f32.mrf.mxu0
    %v606 = vadd.f32 %v457, %v605
    %v607 = vpop.f32.mrf.mxu0
    %608 = vmatprep.mubr.f32.mxu0 0.0
    %609 = vmatmul.mubr.f32.gmra.mxu0 %v421
    %v610 = vpop.f32.mrf.mxu0
    %v611 = vadd.f32 %v457, %v610
    %v612 = vpop.f32.mrf.mxu0
    %613 = vmatprep.mubr.f32.mxu0 0.0
    %614 = vmatmul.mubr.f32.gmra.mxu0 %v422
    %v615 = vpop.f32.mrf.mxu0
    %v616 = vadd.f32 %v457, %v615
    %v617 = vpop.f32.mrf.mxu0
    %618 = vmatprep.mubr.f32.mxu0 0.0
    %619 = vmatmul.mubr.f32.gmra.mxu0 %v423
    %v620 = vpop.f32.mrf.mxu0
    %v621 = vadd.f32 %v457, %v620
    %v622 = vpop.f32.mrf.mxu0
    %623 = vmatprep.mubr.f32.mxu0 0.0
    %624 = vmatmul.mubr.f32.gmra.mxu0 %v424
    %v625 = vpop.f32.mrf.mxu0
    %v626 = vadd.f32 %v457, %v625
    %v627 = vpop.f32.mrf.mxu0
    %628 = vmatprep.mubr.f32.mxu0 0.0
    %629 = vmatmul.mubr.f32.gmra.mxu0 %v425
    %v630 = vpop.f32.mrf.mxu0
    %v631 = vadd.f32 %v457, %v630
    %v632 = vpop.f32.mrf.mxu0
    %633 = vmatprep.mubr.f32.mxu0 0.0
    %634 = vmatmul.mubr.f32.gmra.mxu0 %v426
    %v635 = vpop.f32.mrf.mxu0
    %v636 = vadd.f32 %v457, %v635
    %v637 = vpop.f32.mrf.mxu0
    %638 = vmatprep.mubr.f32.mxu0 0.0
    %639 = vmatmul.mubr.f32.gmra.mxu0 %v427
    %v640 = vpop.f32.mrf.mxu0
    %v641 = vadd.f32 %v457, %v640
    %v642 = vpop.f32.mrf.mxu0
    %643 = vmatprep.mubr.f32.mxu0 0.0
    %644 = vmatmul.mubr.f32.gmra.mxu0 %v428
    %v645 = vpop.f32.mrf.mxu0
    %v646 = vadd.f32 %v457, %v645
    %v647 = vpop.f32.mrf.mxu0
    %648 = vmatprep.mubr.f32.mxu0 0.0
    %649 = vmatmul.mubr.f32.gmra.mxu0 %v429
    %v650 = vpop.f32.mrf.mxu0
    %v651 = vadd.f32 %v457, %v650
    %v652 = vpop.f32.mrf.mxu0
    %653 = vmatprep.mubr.f32.mxu0 0.0
    %654 = vmatmul.mubr.f32.gmra.mxu0 %v430
    %v655 = vpop.f32.mrf.mxu0
    %v656 = vadd.f32 %v457, %v655
    %v657 = vpop.f32.mrf.mxu0
    %658 = vmatprep.mubr.f32.mxu0 0.0
    %659 = vmatmul.mubr.f32.gmra.mxu0 %v431
    %v660 = vpop.f32.mrf.mxu0
    %v661 = vadd.f32 %v457, %v660
    %v662 = vpop.f32.mrf.mxu0
    %663 = vmatprep.mubr.f32.mxu0 0.0
    %664 = vmatmul.mubr.f32.gmra.mxu0 %v432
    %v665 = vpop.f32.mrf.mxu0
    %v666 = vadd.f32 %v457, %v665
    %v667 = vpop.f32.mrf.mxu0
    %668 = vmatprep.mubr.f32.mxu0 0.0
    %669 = vmatmul.mubr.f32.gmra.mxu0 %v433
    %v670 = vpop.f32.mrf.mxu0
    %v671 = vadd.f32 %v457, %v670
    %v672 = vpop.f32.mrf.mxu0
    %673 = vmatprep.mubr.f32.mxu0 0.0
    %674 = vmatmul.mubr.f32.gmra.mxu0 %v434
    %v675 = vpop.f32.mrf.mxu0
    %v676 = vadd.f32 %v457, %v675
    %v677 = vpop.f32.mrf.mxu0
    %678 = vmatprep.mubr.f32.mxu0 0.0
    %679 = vmatmul.mubr.f32.gmra.mxu0 %v435
    %v680 = vpop.f32.mrf.mxu0
    %v681 = vadd.f32 %v457, %v680
    %v682 = vpop.f32.mrf.mxu0
    %683 = vdwg.mxu0
    %v684 = vmax.f32 %v526, 0.0
    %v685 = vmax.f32 %v531, 0.0
    %v686 = vmax.f32 %v536, 0.0
    %v687 = vmax.f32 %v541, 0.0
    %v688 = vmax.f32 %v546, 0.0
    %v689 = vmax.f32 %v551, 0.0
    %v690 = vmax.f32 %v556, 0.0
    %v691 = vmax.f32 %v561, 0.0
    %v692 = vmax.f32 %v566, 0.0
    %v693 = vmax.f32 %v571, 0.0
    %v694 = vmax.f32 %v576, 0.0
    %v695 = vmax.f32 %v581, 0.0
    %v696 = vmax.f32 %v586, 0.0
    %v697 = vmax.f32 %v591, 0.0
    %v698 = vmax.f32 %v596, 0.0
    %v699 = vmax.f32 %v601, 0.0
    %v700 = vmax.f32 %v606, 0.0
    %v701 = vmax.f32 %v611, 0.0
    %v702 = vmax.f32 %v616, 0.0
    %v703 = vmax.f32 %v621, 0.0
    %v704 = vmax.f32 %v626, 0.0
    %v705 = vmax.f32 %v631, 0.0
    %v706 = vmax.f32 %v636, 0.0
    %v707 = vmax.f32 %v641, 0.0
    %v708 = vmax.f32 %v646, 0.0
    %v709 = vmax.f32 %v651, 0.0
    %v710 = vmax.f32 %v656, 0.0
    %v711 = vmax.f32 %v661, 0.0
    %v712 = vmax.f32 %v666, 0.0
    %v713 = vmax.f32 %v671, 0.0
    %v714 = vmax.f32 %v676, 0.0
    %v715 = vmax.f32 %v681, 0.0
    %v716 = vld [vmem:[%s5] sm:$0xff]
    %v717 = vld [vmem:[%s5 + $0x8] sm:$0xff]
    %v718 = vld [vmem:[%s5 + $0x10] sm:$0xff]
    %v719 = vld [vmem:[%s5 + $0x18] sm:$0xff]
    %v720 = vld [vmem:[%s5 + $0x20] sm:$0xff]
    %v721 = vld [vmem:[%s5 + $0x28] sm:$0xff]
    %v722 = vld [vmem:[%s5 + $0x30] sm:$0xff]
    %v723 = vld [vmem:[%s5 + $0x38] sm:$0xff]
    %v724 = vld [vmem:[%s5 + $0x40] sm:$0xff]
    %v725 = vld [vmem:[%s5 + $0x48] sm:$0xff]
    %v726 = vld [vmem:[%s5 + $0x50] sm:$0xff]
    %v727 = vld [vmem:[%s5 + $0x58] sm:$0xff]
    %v728 = vld [vmem:[%s5 + $0x60] sm:$0xff]
    %v729 = vld [vmem:[%s5 + $0x68] sm:$0xff]
    %v730 = vld [vmem:[%s5 + $0x70] sm:$0xff]
    %v731 = vld [vmem:[%s5 + $0x78] sm:$0xff]
    %v732 = vld [vmem:[%s6] sm:$0x1]
    %v734 = vlaneseq
    %v735 = vshrl.u32 %v734, 7
    %v736 = vsub.s32 0, %v735
    %v737 = vrot.slane %v732, %v736
    %739 = vmatprep.subr.mxu0 0.0
    %740 = vmatpush1.msra.mxu0 %v731
    %741 = vmatprep.subr.mxu0 0.0
    %742 = vmatpush1.msra.mxu0 %v730
    %743 = vmatprep.subr.mxu0 0.0
    %744 = vmatpush1.msra.mxu0 %v729
    %745 = vmatprep.subr.mxu0 0.0
    %746 = vmatpush1.msra.mxu0 %v728
    %747 = vmatprep.subr.mxu0 0.0
    %748 = vmatpush1.msra.mxu0 %v727
    %749 = vmatprep.subr.mxu0 0.0
    %750 = vmatpush1.msra.mxu0 %v726
    %751 = vmatprep.subr.mxu0 0.0
    %752 = vmatpush1.msra.mxu0 %v725
    %753 = vmatprep.subr.mxu0 0.0
    %754 = vmatpush1.msra.mxu0 %v724
    %755 = vmatprep.subr.mxu0 0.0
    %756 = vmatpush1.msra.mxu0 %v723
    %757 = vmatprep.subr.mxu0 0.0
    %758 = vmatpush1.msra.mxu0 %v722
    %759 = vmatprep.subr.mxu0 0.0
    %760 = vmatpush1.msra.mxu0 %v721
    %761 = vmatprep.subr.mxu0 0.0
    %762 = vmatpush1.msra.mxu0 %v720
    %763 = vmatprep.subr.mxu0 0.0
    %764 = vmatpush1.msra.mxu0 %v719
    %765 = vmatprep.subr.mxu0 0.0
    %766 = vmatpush1.msra.mxu0 %v718
    %767 = vmatprep.subr.mxu0 0.0
    %768 = vmatpush1.msra.mxu0 %v717
    %769 = vmatprep.subr.mxu0 0.0
    %770 = vmatpush1.msra.mxu0 %v716
    %771 = vmatprep.subr.mxu0 0.0
    %772 = vmatpush2.msra.mxu0 0.0
    %773 = vmatprep.subr.mxu0 0.0
    %774 = vmatpush2.msra.mxu0 0.0
    %775 = vmatprep.subr.mxu0 0.0
    %776 = vmatpush2.msra.mxu0 0.0
    %777 = vmatprep.subr.mxu0 0.0
    %778 = vmatpush2.msra.mxu0 0.0
    %779 = vmatprep.subr.mxu0 0.0
    %780 = vmatpush2.msra.mxu0 0.0
    %781 = vmatprep.subr.mxu0 0.0
    %782 = vmatpush2.msra.mxu0 0.0
    %783 = vmatprep.subr.mxu0 0.0
    %784 = vmatpush2.msra.mxu0 0.0
    %785 = vmatprep.subr.mxu0 0.0
    %786 = vmatpush2.msra.mxu0 0.0
    %787 = vmatprep.subr.mxu0 0.0
    %788 = vmatpush2.msra.mxu0 0.0
    %789 = vmatprep.subr.mxu0 0.0
    %790 = vmatpush2.msra.mxu0 0.0
    %791 = vmatprep.subr.mxu0 0.0
    %792 = vmatpush2.msra.mxu0 0.0
    %793 = vmatprep.subr.mxu0 0.0
    %794 = vmatpush2.msra.mxu0 0.0
    %795 = vmatprep.subr.mxu0 0.0
    %796 = vmatpush2.msra.mxu0 0.0
    %797 = vmatprep.subr.mxu0 0.0
    %798 = vmatpush2.msra.mxu0 0.0
    %799 = vmatprep.subr.mxu0 0.0
    %800 = vmatpush2.msra.mxu0 0.0
    %801 = vmatprep.subr.mxu0 0.0
    %802 = vmatpush2.msra.mxu0 0.0
    %803 = vmatprep.mubr.f32.mxu0 0.0
    %804 = vmatmul.mubr.f32.gmra.mxu0 %v684
    %v805 = vpop.f32.mrf.mxu0
    %v806 = vadd.f32 %v737, %v805
    %v807 = vpop.f32.mrf.mxu0
    %808 = vmatprep.mubr.f32.mxu0 0.0
    %809 = vmatmul.mubr.f32.gmra.mxu0 %v685
    %v810 = vpop.f32.mrf.mxu0
    %v811 = vadd.f32 %v737, %v810
    %v812 = vpop.f32.mrf.mxu0
    %813 = vmatprep.mubr.f32.mxu0 0.0
    %814 = vmatmul.mubr.f32.gmra.mxu0 %v686
    %v815 = vpop.f32.mrf.mxu0
    %v816 = vadd.f32 %v737, %v815
    %v817 = vpop.f32.mrf.mxu0
    %818 = vmatprep.mubr.f32.mxu0 0.0
    %819 = vmatmul.mubr.f32.gmra.mxu0 %v687
    %v820 = vpop.f32.mrf.mxu0
    %v821 = vadd.f32 %v737, %v820
    %v822 = vpop.f32.mrf.mxu0
    %823 = vmatprep.mubr.f32.mxu0 0.0
    %824 = vmatmul.mubr.f32.gmra.mxu0 %v688
    %v825 = vpop.f32.mrf.mxu0
    %v826 = vadd.f32 %v737, %v825
    %v827 = vpop.f32.mrf.mxu0
    %828 = vmatprep.mubr.f32.mxu0 0.0
    %829 = vmatmul.mubr.f32.gmra.mxu0 %v689
    %v830 = vpop.f32.mrf.mxu0
    %v831 = vadd.f32 %v737, %v830
    %v832 = vpop.f32.mrf.mxu0
    %833 = vmatprep.mubr.f32.mxu0 0.0
    %834 = vmatmul.mubr.f32.gmra.mxu0 %v690
    %v835 = vpop.f32.mrf.mxu0
    %v836 = vadd.f32 %v737, %v835
    %v837 = vpop.f32.mrf.mxu0
    %838 = vmatprep.mubr.f32.mxu0 0.0
    %839 = vmatmul.mubr.f32.gmra.mxu0 %v691
    %v840 = vpop.f32.mrf.mxu0
    %v841 = vadd.f32 %v737, %v840
    %v842 = vpop.f32.mrf.mxu0
    %843 = vmatprep.mubr.f32.mxu0 0.0
    %844 = vmatmul.mubr.f32.gmra.mxu0 %v692
    %v845 = vpop.f32.mrf.mxu0
    %v846 = vadd.f32 %v737, %v845
    %v847 = vpop.f32.mrf.mxu0
    %848 = vmatprep.mubr.f32.mxu0 0.0
    %849 = vmatmul.mubr.f32.gmra.mxu0 %v693
    %v850 = vpop.f32.mrf.mxu0
    %v851 = vadd.f32 %v737, %v850
    %v852 = vpop.f32.mrf.mxu0
    %853 = vmatprep.mubr.f32.mxu0 0.0
    %854 = vmatmul.mubr.f32.gmra.mxu0 %v694
    %v855 = vpop.f32.mrf.mxu0
    %v856 = vadd.f32 %v737, %v855
    %v857 = vpop.f32.mrf.mxu0
    %858 = vmatprep.mubr.f32.mxu0 0.0
    %859 = vmatmul.mubr.f32.gmra.mxu0 %v695
    %v860 = vpop.f32.mrf.mxu0
    %v861 = vadd.f32 %v737, %v860
    %v862 = vpop.f32.mrf.mxu0
    %863 = vmatprep.mubr.f32.mxu0 0.0
    %864 = vmatmul.mubr.f32.gmra.mxu0 %v696
    %v865 = vpop.f32.mrf.mxu0
    %v866 = vadd.f32 %v737, %v865
    %v867 = vpop.f32.mrf.mxu0
    %868 = vmatprep.mubr.f32.mxu0 0.0
    %869 = vmatmul.mubr.f32.gmra.mxu0 %v697
    %v870 = vpop.f32.mrf.mxu0
    %v871 = vadd.f32 %v737, %v870
    %v872 = vpop.f32.mrf.mxu0
    %873 = vmatprep.mubr.f32.mxu0 0.0
    %874 = vmatmul.mubr.f32.gmra.mxu0 %v698
    %v875 = vpop.f32.mrf.mxu0
    %v876 = vadd.f32 %v737, %v875
    %v877 = vpop.f32.mrf.mxu0
    %878 = vmatprep.mubr.f32.mxu0 0.0
    %879 = vmatmul.mubr.f32.gmra.mxu0 %v699
    %v880 = vpop.f32.mrf.mxu0
    %v881 = vadd.f32 %v737, %v880
    %v882 = vpop.f32.mrf.mxu0
    %883 = vmatprep.mubr.f32.mxu0 0.0
    %884 = vmatmul.mubr.f32.gmra.mxu0 %v700
    %v885 = vpop.f32.mrf.mxu0
    %v886 = vadd.f32 %v737, %v885
    %v887 = vpop.f32.mrf.mxu0
    %888 = vmatprep.mubr.f32.mxu0 0.0
    %889 = vmatmul.mubr.f32.gmra.mxu0 %v701
    %v890 = vpop.f32.mrf.mxu0
    %v891 = vadd.f32 %v737, %v890
    %v892 = vpop.f32.mrf.mxu0
    %893 = vmatprep.mubr.f32.mxu0 0.0
    %894 = vmatmul.mubr.f32.gmra.mxu0 %v702
    %v895 = vpop.f32.mrf.mxu0
    %v896 = vadd.f32 %v737, %v895
    %v897 = vpop.f32.mrf.mxu0
    %898 = vmatprep.mubr.f32.mxu0 0.0
    %899 = vmatmul.mubr.f32.gmra.mxu0 %v703
    %v900 = vpop.f32.mrf.mxu0
    %v901 = vadd.f32 %v737, %v900
    %v902 = vpop.f32.mrf.mxu0
    %903 = vmatprep.mubr.f32.mxu0 0.0
    %904 = vmatmul.mubr.f32.gmra.mxu0 %v704
    %v905 = vpop.f32.mrf.mxu0
    %v906 = vadd.f32 %v737, %v905
    %v907 = vpop.f32.mrf.mxu0
    %908 = vmatprep.mubr.f32.mxu0 0.0
    %909 = vmatmul.mubr.f32.gmra.mxu0 %v705
    %v910 = vpop.f32.mrf.mxu0
    %v911 = vadd.f32 %v737, %v910
    %v912 = vpop.f32.mrf.mxu0
    %913 = vmatprep.mubr.f32.mxu0 0.0
    %914 = vmatmul.mubr.f32.gmra.mxu0 %v706
    %v915 = vpop.f32.mrf.mxu0
    %v916 = vadd.f32 %v737, %v915
    %v917 = vpop.f32.mrf.mxu0
    %918 = vmatprep.mubr.f32.mxu0 0.0
    %919 = vmatmul.mubr.f32.gmra.mxu0 %v707
    %v920 = vpop.f32.mrf.mxu0
    %v921 = vadd.f32 %v737, %v920
    %v922 = vpop.f32.mrf.mxu0
    %923 = vmatprep.mubr.f32.mxu0 0.0
    %924 = vmatmul.mubr.f32.gmra.mxu0 %v708
    %v925 = vpop.f32.mrf.mxu0
    %v926 = vadd.f32 %v737, %v925
    %v927 = vpop.f32.mrf.mxu0
    %928 = vmatprep.mubr.f32.mxu0 0.0
    %929 = vmatmul.mubr.f32.gmra.mxu0 %v709
    %v930 = vpop.f32.mrf.mxu0
    %v931 = vadd.f32 %v737, %v930
    %v932 = vpop.f32.mrf.mxu0
    %933 = vmatprep.mubr.f32.mxu0 0.0
    %934 = vmatmul.mubr.f32.gmra.mxu0 %v710
    %v935 = vpop.f32.mrf.mxu0
    %v936 = vadd.f32 %v737, %v935
    %v937 = vpop.f32.mrf.mxu0
    %938 = vmatprep.mubr.f32.mxu0 0.0
    %939 = vmatmul.mubr.f32.gmra.mxu0 %v711
    %v940 = vpop.f32.mrf.mxu0
    %v941 = vadd.f32 %v737, %v940
    %v942 = vpop.f32.mrf.mxu0
    %943 = vmatprep.mubr.f32.mxu0 0.0
    %944 = vmatmul.mubr.f32.gmra.mxu0 %v712
    %v945 = vpop.f32.mrf.mxu0
    %v946 = vadd.f32 %v737, %v945
    %v947 = vpop.f32.mrf.mxu0
    %948 = vmatprep.mubr.f32.mxu0 0.0
    %949 = vmatmul.mubr.f32.gmra.mxu0 %v713
    %v950 = vpop.f32.mrf.mxu0
    %v951 = vadd.f32 %v737, %v950
    %v952 = vpop.f32.mrf.mxu0
    %953 = vmatprep.mubr.f32.mxu0 0.0
    %954 = vmatmul.mubr.f32.gmra.mxu0 %v714
    %v955 = vpop.f32.mrf.mxu0
    %v956 = vadd.f32 %v737, %v955
    %v957 = vpop.f32.mrf.mxu0
    %958 = vmatprep.mubr.f32.mxu0 0.0
    %959 = vmatmul.mubr.f32.gmra.mxu0 %v715
    %v960 = vpop.f32.mrf.mxu0
    %v961 = vadd.f32 %v737, %v960
    %v962 = vpop.f32.mrf.mxu0
    %963 = vdwg.mxu0
    %v964 = vxor.u32 %v806, 2147483648
    %v965 = vxor.u32 %v811, 2147483648
    %v966 = vxor.u32 %v816, 2147483648
    %v967 = vxor.u32 %v821, 2147483648
    %v968 = vxor.u32 %v826, 2147483648
    %v969 = vxor.u32 %v831, 2147483648
    %v970 = vxor.u32 %v836, 2147483648
    %v971 = vxor.u32 %v841, 2147483648
    %v972 = vxor.u32 %v846, 2147483648
    %v973 = vxor.u32 %v851, 2147483648
    %v974 = vxor.u32 %v856, 2147483648
    %v975 = vxor.u32 %v861, 2147483648
    %v976 = vxor.u32 %v866, 2147483648
    %v977 = vxor.u32 %v871, 2147483648
    %v978 = vxor.u32 %v876, 2147483648
    %v979 = vxor.u32 %v881, 2147483648
    %v980 = vxor.u32 %v886, 2147483648
    %v981 = vxor.u32 %v891, 2147483648
    %v982 = vxor.u32 %v896, 2147483648
    %v983 = vxor.u32 %v901, 2147483648
    %v984 = vxor.u32 %v906, 2147483648
    %v985 = vxor.u32 %v911, 2147483648
    %v986 = vxor.u32 %v916, 2147483648
    %v987 = vxor.u32 %v921, 2147483648
    %v988 = vxor.u32 %v926, 2147483648
    %v989 = vxor.u32 %v931, 2147483648
    %v990 = vxor.u32 %v936, 2147483648
    %v991 = vxor.u32 %v941, 2147483648
    %v992 = vxor.u32 %v946, 2147483648
    %v993 = vxor.u32 %v951, 2147483648
    %v994 = vxor.u32 %v956, 2147483648
    %v995 = vxor.u32 %v961, 2147483648
    %v996 = vmul.f32 %v964, 1.442695
    %v997 = vpow.pop %v996
    %v998 = vmul.f32 %v965, 1.442695
    %v999 = vpow.pop %v998
    %v1000 = vmul.f32 %v966, 1.442695
    %v1001 = vpow.pop %v1000
    %v1002 = vmul.f32 %v967, 1.442695
    %v1003 = vpow.pop %v1002
    %v1004 = vmul.f32 %v968, 1.442695
    %v1005 = vpow.pop %v1004
    %v1006 = vmul.f32 %v969, 1.442695
    %v1007 = vpow.pop %v1006
    %v1008 = vmul.f32 %v970, 1.442695
    %v1009 = vpow.pop %v1008
    %v1010 = vmul.f32 %v971, 1.442695
    %v1011 = vpow.pop %v1010
    %v1012 = vmul.f32 %v972, 1.442695
    %v1013 = vpow.pop %v1012
    %v1014 = vmul.f32 %v973, 1.442695
    %v1015 = vpow.pop %v1014
    %v1016 = vmul.f32 %v974, 1.442695
    %v1017 = vpow.pop %v1016
    %v1018 = vmul.f32 %v975, 1.442695
    %v1019 = vpow.pop %v1018
    %v1020 = vmul.f32 %v976, 1.442695
    %v1021 = vpow.pop %v1020
    %v1022 = vmul.f32 %v977, 1.442695
    %v1023 = vpow.pop %v1022
    %v1024 = vmul.f32 %v978, 1.442695
    %v1025 = vpow.pop %v1024
    %v1026 = vmul.f32 %v979, 1.442695
    %v1027 = vpow.pop %v1026
    %v1028 = vmul.f32 %v980, 1.442695
    %v1029 = vpow.pop %v1028
    %v1030 = vmul.f32 %v981, 1.442695
    %v1031 = vpow.pop %v1030
    %v1032 = vmul.f32 %v982, 1.442695
    %v1033 = vpow.pop %v1032
    %v1034 = vmul.f32 %v983, 1.442695
    %v1035 = vpow.pop %v1034
    %v1036 = vmul.f32 %v984, 1.442695
    %v1037 = vpow.pop %v1036
    %v1038 = vmul.f32 %v985, 1.442695
    %v1039 = vpow.pop %v1038
    %v1040 = vmul.f32 %v986, 1.442695
    %v1041 = vpow.pop %v1040
    %v1042 = vmul.f32 %v987, 1.442695
    %v1043 = vpow.pop %v1042
    %v1044 = vmul.f32 %v988, 1.442695
    %v1045 = vpow.pop %v1044
    %v1046 = vmul.f32 %v989, 1.442695
    %v1047 = vpow.pop %v1046
    %v1048 = vmul.f32 %v990, 1.442695
    %v1049 = vpow.pop %v1048
    %v1050 = vmul.f32 %v991, 1.442695
    %v1051 = vpow.pop %v1050
    %v1052 = vmul.f32 %v992, 1.442695
    %v1053 = vpow.pop %v1052
    %v1054 = vmul.f32 %v993, 1.442695
    %v1055 = vpow.pop %v1054
    %v1056 = vmul.f32 %v994, 1.442695
    %v1057 = vpow.pop %v1056
    %v1058 = vmul.f32 %v995, 1.442695
    %v1059 = vpow.pop %v1058
    %v1060 = vadd.f32 %v997, 1.0
    %v1061 = vadd.f32 %v999, 1.0
    %v1062 = vadd.f32 %v1001, 1.0
    %v1063 = vadd.f32 %v1003, 1.0
    %v1064 = vadd.f32 %v1005, 1.0
    %v1065 = vadd.f32 %v1007, 1.0
    %v1066 = vadd.f32 %v1009, 1.0
    %v1067 = vadd.f32 %v1011, 1.0
    %v1068 = vadd.f32 %v1013, 1.0
    %v1069 = vadd.f32 %v1015, 1.0
    %v1070 = vadd.f32 %v1017, 1.0
    %v1071 = vadd.f32 %v1019, 1.0
    %v1072 = vadd.f32 %v1021, 1.0
    %v1073 = vadd.f32 %v1023, 1.0
    %v1074 = vadd.f32 %v1025, 1.0
    %v1075 = vadd.f32 %v1027, 1.0
    %v1076 = vadd.f32 %v1029, 1.0
    %v1077 = vadd.f32 %v1031, 1.0
    %v1078 = vadd.f32 %v1033, 1.0
    %v1079 = vadd.f32 %v1035, 1.0
    %v1080 = vadd.f32 %v1037, 1.0
    %v1081 = vadd.f32 %v1039, 1.0
    %v1082 = vadd.f32 %v1041, 1.0
    %v1083 = vadd.f32 %v1043, 1.0
    %v1084 = vadd.f32 %v1045, 1.0
    %v1085 = vadd.f32 %v1047, 1.0
    %v1086 = vadd.f32 %v1049, 1.0
    %v1087 = vadd.f32 %v1051, 1.0
    %v1088 = vadd.f32 %v1053, 1.0
    %v1089 = vadd.f32 %v1055, 1.0
    %v1090 = vadd.f32 %v1057, 1.0
    %v1091 = vadd.f32 %v1059, 1.0
    %v1092 = vrcp.pop %v1060
    %v1093 = vmul.f32 1.0, %v1092
    %v1094 = vrcp.pop %v1061
    %v1095 = vmul.f32 1.0, %v1094
    %v1096 = vrcp.pop %v1062
    %v1097 = vmul.f32 1.0, %v1096
    %v1098 = vrcp.pop %v1063
    %v1099 = vmul.f32 1.0, %v1098
    %v1100 = vrcp.pop %v1064
    %v1101 = vmul.f32 1.0, %v1100
    %v1102 = vrcp.pop %v1065
    %v1103 = vmul.f32 1.0, %v1102
    %v1104 = vrcp.pop %v1066
    %v1105 = vmul.f32 1.0, %v1104
    %v1106 = vrcp.pop %v1067
    %v1107 = vmul.f32 1.0, %v1106
    %v1108 = vrcp.pop %v1068
    %v1109 = vmul.f32 1.0, %v1108
    %v1110 = vrcp.pop %v1069
    %v1111 = vmul.f32 1.0, %v1110
    %v1112 = vrcp.pop %v1070
    %v1113 = vmul.f32 1.0, %v1112
    %v1114 = vrcp.pop %v1071
    %v1115 = vmul.f32 1.0, %v1114
    %v1116 = vrcp.pop %v1072
    %v1117 = vmul.f32 1.0, %v1116
    %v1118 = vrcp.pop %v1073
    %v1119 = vmul.f32 1.0, %v1118
    %v1120 = vrcp.pop %v1074
    %v1121 = vmul.f32 1.0, %v1120
    %v1122 = vrcp.pop %v1075
    %v1123 = vmul.f32 1.0, %v1122
    %v1124 = vrcp.pop %v1076
    %v1125 = vmul.f32 1.0, %v1124
    %v1126 = vrcp.pop %v1077
    %v1127 = vmul.f32 1.0, %v1126
    %v1128 = vrcp.pop %v1078
    %v1129 = vmul.f32 1.0, %v1128
    %v1130 = vrcp.pop %v1079
    %v1131 = vmul.f32 1.0, %v1130
    %v1132 = vrcp.pop %v1080
    %v1133 = vmul.f32 1.0, %v1132
    %v1134 = vrcp.pop %v1081
    %v1135 = vmul.f32 1.0, %v1134
    %v1136 = vrcp.pop %v1082
    %v1137 = vmul.f32 1.0, %v1136
    %v1138 = vrcp.pop %v1083
    %v1139 = vmul.f32 1.0, %v1138
    %v1140 = vrcp.pop %v1084
    %v1141 = vmul.f32 1.0, %v1140
    %v1142 = vrcp.pop %v1085
    %v1143 = vmul.f32 1.0, %v1142
    %v1144 = vrcp.pop %v1086
    %v1145 = vmul.f32 1.0, %v1144
    %v1146 = vrcp.pop %v1087
    %v1147 = vmul.f32 1.0, %v1146
    %v1148 = vrcp.pop %v1088
    %v1149 = vmul.f32 1.0, %v1148
    %v1150 = vrcp.pop %v1089
    %v1151 = vmul.f32 1.0, %v1150
    %v1152 = vrcp.pop %v1090
    %v1153 = vmul.f32 1.0, %v1152
    %v1154 = vrcp.pop %v1091
    %v1155 = vmul.f32 1.0, %v1154
    %vm1156 = vcmask 31744
    %1157 = vst.msk [vmem:[#allocation5] sm:$0xff] %vm1156, %v1093
    %1158 = vst.msk [vmem:[#allocation5 + $0x8] sm:$0xff] %vm1156, %v1095
    %1159 = vst.msk [vmem:[#allocation5 + $0x10] sm:$0xff] %vm1156, %v1097
    %1160 = vst.msk [vmem:[#allocation5 + $0x18] sm:$0xff] %vm1156, %v1099
    %1161 = vst.msk [vmem:[#allocation5 + $0x20] sm:$0xff] %vm1156, %v1101
    %1162 = vst.msk [vmem:[#allocation5 + $0x28] sm:$0xff] %vm1156, %v1103
    %1163 = vst.msk [vmem:[#allocation5 + $0x30] sm:$0xff] %vm1156, %v1105
    %1164 = vst.msk [vmem:[#allocation5 + $0x38] sm:$0xff] %vm1156, %v1107
    %1165 = vst.msk [vmem:[#allocation5 + $0x40] sm:$0xff] %vm1156, %v1109
    %1166 = vst.msk [vmem:[#allocation5 + $0x48] sm:$0xff] %vm1156, %v1111
    %1167 = vst.msk [vmem:[#allocation5 + $0x50] sm:$0xff] %vm1156, %v1113
    %1168 = vst.msk [vmem:[#allocation5 + $0x58] sm:$0xff] %vm1156, %v1115
    %1169 = vst.msk [vmem:[#allocation5 + $0x60] sm:$0xff] %vm1156, %v1117
    %1170 = vst.msk [vmem:[#allocation5 + $0x68] sm:$0xff] %vm1156, %v1119
    %1171 = vst.msk [vmem:[#allocation5 + $0x70] sm:$0xff] %vm1156, %v1121
    %1172 = vst.msk [vmem:[#allocation5 + $0x78] sm:$0xff] %vm1156, %v1123
    %1173 = vst.msk [vmem:[#allocation5 + $0x80] sm:$0xff] %vm1156, %v1125
    %1174 = vst.msk [vmem:[#allocation5 + $0x88] sm:$0xff] %vm1156, %v1127
    %1175 = vst.msk [vmem:[#allocation5 + $0x90] sm:$0xff] %vm1156, %v1129
    %1176 = vst.msk [vmem:[#allocation5 + $0x98] sm:$0xff] %vm1156, %v1131
    %1177 = vst.msk [vmem:[#allocation5 + $0xa0] sm:$0xff] %vm1156, %v1133
    %1178 = vst.msk [vmem:[#allocation5 + $0xa8] sm:$0xff] %vm1156, %v1135
    %1179 = vst.msk [vmem:[#allocation5 + $0xb0] sm:$0xff] %vm1156, %v1137
    %1180 = vst.msk [vmem:[#allocation5 + $0xb8] sm:$0xff] %vm1156, %v1139
    %1181 = vst.msk [vmem:[#allocation5 + $0xc0] sm:$0xff] %vm1156, %v1141
    %1182 = vst.msk [vmem:[#allocation5 + $0xc8] sm:$0xff] %vm1156, %v1143
    %1183 = vst.msk [vmem:[#allocation5 + $0xd0] sm:$0xff] %vm1156, %v1145
    %1184 = vst.msk [vmem:[#allocation5 + $0xd8] sm:$0xff] %vm1156, %v1147
    %1185 = vst.msk [vmem:[#allocation5 + $0xe0] sm:$0xff] %vm1156, %v1149
    %1186 = vst.msk [vmem:[#allocation5 + $0xe8] sm:$0xff] %vm1156, %v1151
    %1187 = vst.msk [vmem:[#allocation5 + $0xf0] sm:$0xff] %vm1156, %v1153
    %1188 = vst.msk [vmem:[#allocation5 + $0xf8] sm:$0xff] %vm1156, %v1155
    // Predicated region
    $region34: #{actor_forward.1} parent=1 // pred_check
      _
    $region35: #{actor_forward.1} parent=1 // pred_check_branch
      %1190 = sbr.rel (0) target = $region37
    $region36: #{actor_forward.1} parent=1 // pred_region
      %s1192 = ssub.s32 4096, 32
      %1193 = vsyncadd [#allocation4], %s1192
      %s1194 = sshll.u32 [#allocation5], 4
      %s1195 = int_to_ptr.vmem [resolvable:$true] %s1194
      %1200 = dma.vmem_to_hbm [thread:$0]  %s1195, 32, %s7, [#allocation4], 32, 32, 2
    $region37: #{actor_forward.1} parent=1 // pred_fallthru
      _
    // Predicated region
    $region38: #{actor_forward.1} parent=1 // pred_check
      _
    $region39: #{actor_forward.1} parent=1 // pred_check_branch
      %1202 = sbr.rel (0) target = $region41
    $region40: #{actor_forward.1} parent=1 // pred_region
      %1203 = dma.done [#allocation4], 4096
    $region41: #{actor_forward.1} parent=1 // pred_fallthru
      _
    %1204 = vsyncpa [#allocation3], 1
    %1205 = vsyncpa [#allocation4], 1

</llo_original>
